<compile_context>
chip_gen: v7x
topology: tpu7x:2x2x1
jax: 0.10.0
libtpu: 0.0.40
codegen_flags: <defaults>
</compile_context>

<pallas_src>
import functools

import numpy as np
import jax
import jax.numpy as jnp
from jax.experimental import pallas as pl
from jax.experimental.pallas import tpu as pltpu


def _round_up(v, m):
    return ((v + m - 1) // m) * m


def _pick_row_tile(H, Wp, target_lanes=2048):
    """Largest row tile TH dividing H with TH*Wp <= target_lanes, preferring
    >= 2 grid steps (for pipelining) and >= 128 lanes per output tile."""
    cands = [th for th in range(1, H + 1)
             if H % th == 0 and th * Wp <= target_lanes and H // th >= 2]
    if not cands:
        return H
    good = [th for th in cands if th * Wp >= 128]
    return max(good) if good else max(cands)


# --------------------------------------------------------------------------
# Pallas kernel: one grid step == one (sample, row-tile)
# --------------------------------------------------------------------------
def _modulated_style_conv_kernel(w_ref, s_ref, x_ref, noise_ref, bias_ref, nw_ref,
                                 o_ref, wmod_ref, *, K, Wp, eps, demodulate,
                                 negative_slope, act_scale):
    # w_ref     : (K*K, C_out, C_in_p)  f32   equalized-lr weight, tap-major (shared)
    # s_ref     : (1, 1, C_in_p)        f32   per-sample style scale
    # x_ref     : (1, 1, C_in_p, LW)    bf16  flattened padded activation window
    #                                         (TH + K - 1 halo rows, width Wp)
    # noise_ref : (1, 1, 1, TH*Wp)      f32   noise map, padded-width layout
    # bias_ref  : (C_out, 1)            f32   fused-bias-leakyrelu bias
    # nw_ref    : (1,)  SMEM            f32   noise-injection weight (scalar)
    # o_ref     : (1, 1, C_out, TH*Wp)        output tile (cols with j >= W are scrap)
    # wmod_ref  : (K*K, C_out, C_in_p)  f32   VMEM scratch: modulated weight
    tile = o_ref.shape[-1]
    c_out = o_ref.shape[-2]

    # ---- per-sample modulation / demodulation, hoisted to the first row tile ----
    @pl.when(pl.program_id(1) == 0)
    def _():
        w = w_ref[...]                                       # (KK, C_out, C_in_p)
        sv = s_ref[0]                                        # (1, C_in_p)
        wm = w * sv[None, :, :]                              # style modulation
        if demodulate:
            sq = jnp.sum(wm * wm, axis=0)                    # (C_out, C_in_p)
            denom = jnp.sum(sq, axis=1, keepdims=True) + eps  # (C_out, 1)
            wm = wm * jax.lax.rsqrt(denom)[None, :, :]       # demodulation
        wmod_ref[...] = wm

    wm_bf = wmod_ref[...].astype(jnp.bfloat16)               # bf16 LHS for the MXU
    xw = x_ref[0, 0]                                         # (C_in_p, LW) bf16

    # ---- conv as K*K accumulating matmuls over shifted lane slices ----
    acc = jnp.zeros((c_out, tile), dtype=jnp.float32)
    for ky in range(K):
        for kx in range(K):
            off = ky * Wp + kx                               # static lane offset
            slab = xw[:, off:off + tile]                     # (C_in_p, TH*Wp)
            acc = acc + jnp.dot(wm_bf[ky * K + kx], slab,
                                preferred_element_type=jnp.float32)

    # ---- noise injection + fused bias leaky-ReLU (all f32) ----
    out = acc + nw_ref[0] * noise_ref[0, 0]
    out = out + bias_ref[...]
    out = jnp.where(out >= 0.0, out, negative_slope * out) * act_scale
    o_ref[0, 0] = out.astype(o_ref.dtype)


# --------------------------------------------------------------------------
# Wrapper (glue): style linear, equalized-lr scaling, layout prep, pallas_call
# --------------------------------------------------------------------------
def modulated_style_conv(x, style, noise, params, *, kernel_size=3,
                         demodulate=True, style_bias=0.0, eps=1e-8):
    N, C_in, H, W = x.shape
    K = kernel_size
    pad = K // 2
    C_out = params["conv_weight"].shape[1]
    Hp, Wp = H + 2 * pad, W + 2 * pad
    KK = K * K
    C_in_p = _round_up(max(C_in, 16), 16)          # bf16 sublane-pack friendly

    TH = _pick_row_tile(H, Wp)                     # output rows per tile
    T = H // TH
    TILE = TH * Wp                                 # lane dim of one output tile
    LW = (TH + 2 * pad) * Wp + 2 * pad             # halo'd flattened window length

    # --- style modulation: EqualLinearActModule (gain=1, lr_mul=1, no act) ---
    style_scale = 1.0 / np.sqrt(style.shape[1])
    s = style @ (params["style_weight"] * style_scale).T + params["style_bias"]
    s = s + style_bias                                          # (N, C_in)
    s = jnp.pad(s, ((0, 0), (0, C_in_p - C_in))).reshape(N, 1, C_in_p)

    # --- equalized-lr conv weight, tap-major, zero-padded channels ---
    conv_scale = 1.0 / np.sqrt(C_in * K * K)
    w = params["conv_weight"][0] * conv_scale                   # (C_out, C_in, K, K)
    w = jnp.pad(w, ((0, 0), (0, C_in_p - C_in), (0, 0), (0, 0)))
    w_taps = jnp.transpose(w, (2, 3, 0, 1)).reshape(KK, C_out, C_in_p)

    # --- padded activation flattened to a lane-dense bf16 slab + row-halo windows ---
    x_p = jnp.pad(x, ((0, 0), (0, C_in_p - C_in), (pad, pad + 1), (pad, pad)))
    x_flat = x_p.reshape(N, C_in_p, (Hp + 1) * Wp).astype(jnp.bfloat16)
    x_win = jnp.stack([x_flat[:, :, t * TH * Wp: t * TH * Wp + LW]
                       for t in range(T)], axis=1)              # (N, T, C_in_p, LW)

    # --- noise in the same padded-width flattened layout ---
    noise_p = jnp.pad(noise[:, 0].astype(jnp.float32),
                      ((0, 0), (0, 0), (0, 2 * pad)))           # (N, H, Wp)
    noise_r = noise_p.reshape(N, T, 1, TILE)

    bias = params["act_bias"].reshape(C_out, 1).astype(jnp.float32)
    nw = params["noise_weight"].reshape(1).astype(jnp.float32)

    kernel = functools.partial(
        _modulated_style_conv_kernel,
        K=K, Wp=Wp, eps=eps, demodulate=demodulate,
        negative_slope=0.2, act_scale=float(np.sqrt(2.0)))

    out = pl.pallas_call(
        kernel,
        out_shape=jax.ShapeDtypeStruct((N, T, C_out, TILE), jnp.float32),
        grid_spec=pltpu.PrefetchScalarGridSpec(
            num_scalar_prefetch=0,
            grid=(N, T),
            in_specs=[
                pl.BlockSpec((KK, C_out, C_in_p), lambda n, t: (0, 0, 0)),   # weight
                pl.BlockSpec((1, 1, C_in_p), lambda n, t: (n, 0, 0)),        # style
                pl.BlockSpec((1, 1, C_in_p, LW), lambda n, t: (n, t, 0, 0)),  # activation window
                pl.BlockSpec((1, 1, 1, TILE), lambda n, t: (n, t, 0, 0)),    # noise
                pl.BlockSpec((C_out, 1), lambda n, t: (0, 0)),               # act bias
                pl.BlockSpec(memory_space=pltpu.MemorySpace.SMEM),           # noise weight
            ],
            out_specs=pl.BlockSpec((1, 1, C_out, TILE), lambda n, t: (n, t, 0, 0)),
            scratch_shapes=[pltpu.VMEM((KK, C_out, C_in_p), jnp.float32)],
        ),
        compiler_params=pltpu.CompilerParams(
            dimension_semantics=("parallel", "arbitrary"),
            vmem_limit_bytes=64 * 1024 * 1024),
    )(w_taps, s, x_win, noise_r, bias, nw)

    # Drop the scrap padded-width columns and restore NCHW.
    out = out.reshape(N, T, C_out, TH, Wp)[..., :W]
    out = jnp.transpose(out, (0, 2, 1, 3, 4)).reshape(N, C_out, H, W)
    return out.astype(x.dtype)


# --------------------------------------------------------------------------
# Pure-JAX reference (mirrors the PyTorch forward semantics, f32 throughout)
# --------------------------------------------------------------------------
def reference_forward(x, style, noise, params, *, kernel_size=3, eps=1e-8):
    N, C_in, H, W = x.shape
    K = kernel_size
    C_out = params["conv_weight"].shape[1]

    style_scale = 1.0 / np.sqrt(style.shape[1])
    s = style @ (params["style_weight"] * style_scale).T + params["style_bias"]

    conv_scale = 1.0 / np.sqrt(C_in * K * K)
    w = params["conv_weight"] * conv_scale                       # (1,Co,Ci,K,K)
    wmod = w * s[:, None, :, None, None]                         # (N,Co,Ci,K,K)
    demod = jax.lax.rsqrt(jnp.sum(wmod ** 2, axis=(2, 3, 4)) + eps)
    wmod = wmod * demod[:, :, None, None, None]

    outs = []
    for n in range(N):                                           # grouped conv
        outs.append(jax.lax.conv_general_dilated(
            x[n:n + 1], wmod[n], window_strides=(1, 1),
            padding=((K // 2, K // 2), (K // 2, K // 2)),
            dimension_numbers=("NCHW", "OIHW", "NCHW")))
    out = jnp.concatenate(outs, axis=0)

    out = out + params["noise_weight"][0] * noise                # noise injection
    out = out + params["act_bias"][None, :, None, None]          # fused bias
    out = jnp.where(out >= 0.0, out, 0.2 * out) * np.sqrt(2.0)   # leaky relu * sqrt(2)
    return out


# --------------------------------------------------------------------------
if __name__ == "__main__":
    # Module config (defaults of ModulatedStyleConv).
    N, C_in, C_out, K = 2, 4, 8, 3
    style_channels = 8
    H = W = 16

    key = jax.random.PRNGKey(0)
    k_x, k_style, k_noise, k_wconv, k_wstyle, k_bias = jax.random.split(key, 6)

    x = jax.random.normal(k_x, (N, C_in, H, W), dtype=jnp.float32)
    style = jax.random.normal(k_style, (N, style_channels), dtype=jnp.float32)
    noise = jax.random.normal(k_noise, (N, 1, H, W), dtype=jnp.float32)

    # Parameter shapes match the PyTorch __init__; act_bias / noise_weight are
    # given non-trivial values so the noise + bias paths are numerically
    # exercised (the module inits them to zero).
    params = {
        # ModulatedConv2d.weight: (1, out, in, k, k), randn (lr_mul=1)
        "conv_weight": jax.random.normal(k_wconv, (1, C_out, C_in, K, K),
                                         dtype=jnp.float32),
        # EqualLinearActModule linear weight: (in_channels, style_channels)
        "style_weight": jax.random.normal(k_wstyle, (C_in, style_channels),
                                          dtype=jnp.float32),
        # style modulation bias, bias_init=1.0
        "style_bias": jnp.full((C_in,), 1.0, dtype=jnp.float32),
        # FusedBiasLeakyReLU bias
        "act_bias": 0.1 * jax.random.normal(k_bias, (C_out,), dtype=jnp.float32),
        # NoiseInjection weight
        "noise_weight": jnp.full((1,), 0.25, dtype=jnp.float32),
    }

    # TODO(synk): upsample/downsample UpFIRDn blur branch and the fp16 clamp
    # path are not exercised by the default config and are not implemented.
    out = modulated_style_conv(x, style, noise, params, kernel_size=K)
    out = jax.block_until_ready(out)

    ref = reference_forward(x, style, noise, params, kernel_size=K)
    ref = jax.block_until_ready(ref)

    # bf16 MXU operands -> ~1e-2-level drift vs the all-f32 reference.
    np.testing.assert_allclose(np.asarray(out), np.asarray(ref),
                               rtol=5e-2, atol=5e-2)
    print("KERNEL_OK")
</pallas_src>

<mosaic_0001>
module attributes {stable_mosaic.version = 11 : i64} {
  func.func @_modulated_style_conv_kernel(%arg0: i32, %arg1: i32, %arg2: memref<9x8x16xf32, #tpu.memory_space<vmem>>, %arg3: memref<1x1x16xf32, #tpu.memory_space<vmem>>, %arg4: memref<1x1x16x182xbf16, #tpu.memory_space<vmem>>, %arg5: memref<1x1x1x144xf32, #tpu.memory_space<vmem>>, %arg6: memref<8x1xf32, #tpu.memory_space<vmem>>, %arg7: memref<1xf32, #tpu.memory_space<smem>>, %arg8: memref<1x1x8x144xf32, #tpu.memory_space<vmem>>, %arg9: memref<9x8x16xf32, #tpu.memory_space<vmem>>) attributes {dimension_semantics = [#tpu.dimension_semantics<parallel>, #tpu.dimension_semantics<arbitrary>], iteration_bounds = array<i64: 2, 2>, scalar_prefetch = 0 : i64, scratch_operands = 1 : i64, tpu.core_type = #tpu.core_type<tc>, window_params = [{pipeline_mode = #tpu.pipeline_mode<synchronous>, transform_indices = @transform_0, window_bounds = array<i64: 9, 8, 16>}, {transform_indices = @transform_1, window_bounds = array<i64: 1, 1, 16>}, {transform_indices = @transform_2, window_bounds = array<i64: 1, 1, 16, 182>}, {transform_indices = @transform_3, window_bounds = array<i64: 1, 1, 1, 144>}, {pipeline_mode = #tpu.pipeline_mode<synchronous>, transform_indices = @transform_4, window_bounds = array<i64: 8, 1>}, {transform_indices = @transform_5, window_bounds = array<i64: 1>}, {transform_indices = @transform_6, window_bounds = array<i64: 1, 1, 8, 144>}]} {
    %c0_i32 = arith.constant 0 : i32
    %0 = arith.cmpi eq, %arg1, %c0_i32 : i32
    %1 = arith.extui %0 : i1 to i32
    %c0_i32_0 = arith.constant 0 : i32
    %2 = arith.cmpi ne, %1, %c0_i32_0 : i32
    scf.if %2 {
      %c0_30 = arith.constant 0 : index
      %c0_31 = arith.constant 0 : index
      %c0_32 = arith.constant 0 : index
      %73 = vector.load %arg2[%c0_30, %c0_31, %c0_32] : memref<9x8x16xf32, #tpu.memory_space<vmem>>, vector<9x8x16xf32>
      %c0_33 = arith.constant 0 : index
      %c0_34 = arith.constant 0 : index
      %c0_35 = arith.constant 0 : index
      %74 = vector.load %arg3[%c0_33, %c0_34, %c0_35] : memref<1x1x16xf32, #tpu.memory_space<vmem>>, vector<1x1x16xf32>
      %75 = vector.shape_cast %74 : vector<1x1x16xf32> to vector<1x16xf32>
      %76 = vector.shape_cast %75 : vector<1x16xf32> to vector<1x1x16xf32>
      %77 = vector.broadcast %76 : vector<1x1x16xf32> to vector<9x8x16xf32>
      %78 = arith.mulf %73, %77 : vector<9x8x16xf32>
      %79 = arith.mulf %78, %78 : vector<9x8x16xf32>
      %cst_36 = arith.constant dense<0.000000e+00> : vector<8x16xf32>
      %80 = vector.multi_reduction <add>, %79, %cst_36 [0] : vector<9x8x16xf32> to vector<8x16xf32>
      %cst_37 = arith.constant dense<0.000000e+00> : vector<8xf32>
      %81 = vector.multi_reduction <add>, %80, %cst_37 [1] : vector<8x16xf32> to vector<8xf32>
      %82 = vector.shape_cast %81 : vector<8xf32> to vector<8x1xf32>
      %cst_38 = arith.constant 9.99999993E-9 : f32
      %83 = vector.broadcast %cst_38 : f32 to vector<8x1xf32>
      %84 = arith.addf %82, %83 : vector<8x1xf32>
      %85 = math.rsqrt %84 : vector<8x1xf32>
      %86 = vector.shape_cast %85 : vector<8x1xf32> to vector<1x8x1xf32>
      %87 = vector.broadcast %86 : vector<1x8x1xf32> to vector<9x8x16xf32>
      %88 = arith.mulf %78, %87 : vector<9x8x16xf32>
      %c0_39 = arith.constant 0 : index
      %c0_40 = arith.constant 0 : index
      %c0_41 = arith.constant 0 : index
      %89 = vector.load %arg9[%c0_39, %c0_40, %c0_41] : memref<9x8x16xf32, #tpu.memory_space<vmem>>, vector<9x8x16xf32>
      tpu.vector_store %arg9[%c0_39, %c0_40, %c0_41], %88 {strides = array<i32>} : memref<9x8x16xf32, #tpu.memory_space<vmem>>, vector<9x8x16xf32>,
    } else {
    }
    %c0 = arith.constant 0 : index
    %c0_1 = arith.constant 0 : index
    %c0_2 = arith.constant 0 : index
    %3 = vector.load %arg9[%c0, %c0_1, %c0_2] : memref<9x8x16xf32, #tpu.memory_space<vmem>>, vector<9x8x16xf32>
    %4 = arith.truncf %3 : vector<9x8x16xf32> to vector<9x8x16xbf16>
    %c0_3 = arith.constant 0 : index
    %c0_4 = arith.constant 0 : index
    %c0_5 = arith.constant 0 : index
    %c0_6 = arith.constant 0 : index
    %5 = vector.load %arg4[%c0_3, %c0_4, %c0_5, %c0_6] : memref<1x1x16x182xbf16, #tpu.memory_space<vmem>>, vector<1x1x16x182xbf16>
    %6 = vector.shape_cast %5 : vector<1x1x16x182xbf16> to vector<16x182xbf16>
    %cst = arith.constant 0.000000e+00 : f32
    %7 = vector.broadcast %cst : f32 to vector<8x144xf32>
    %8 = vector.extract_strided_slice %6 {offsets = [0, 0], sizes = [16, 144], strides = [1, 1]} : vector<16x182xbf16> to vector<16x144xbf16>
    %9 = vector.extract_strided_slice %4 {offsets = [0, 0, 0], sizes = [1, 8, 16], strides = [1, 1, 1]} : vector<9x8x16xbf16> to vector<1x8x16xbf16>
    %10 = vector.shape_cast %9 : vector<1x8x16xbf16> to vector<8x16xbf16>
    %cst_7 = arith.constant dense<0.000000e+00> : vector<8x144xf32>
    %11 = tpu.matmul %10, %8, %cst_7 {dimension_numbers = #tpu.dot_dimension_numbers<[1], [0], [0], [1], [0, 0, 1, 1], [], []>} : vector<8x16xbf16>, vector<16x144xbf16>, vector<8x144xf32> -> vector<8x144xf32>
    %12 = arith.addf %7, %11 : vector<8x144xf32>
    %13 = vector.extract_strided_slice %6 {offsets = [0, 1], sizes = [16, 144], strides = [1, 1]} : vector<16x182xbf16> to vector<16x144xbf16>
    %14 = vector.extract_strided_slice %4 {offsets = [1, 0, 0], sizes = [1, 8, 16], strides = [1, 1, 1]} : vector<9x8x16xbf16> to vector<1x8x16xbf16>
    %15 = vector.shape_cast %14 : vector<1x8x16xbf16> to vector<8x16xbf16>
    %cst_8 = arith.constant dense<0.000000e+00> : vector<8x144xf32>
    %16 = tpu.matmul %15, %13, %cst_8 {dimension_numbers = #tpu.dot_dimension_numbers<[1], [0], [0], [1], [0, 0, 1, 1], [], []>} : vector<8x16xbf16>, vector<16x144xbf16>, vector<8x144xf32> -> vector<8x144xf32>
    %17 = arith.addf %12, %16 : vector<8x144xf32>
    %18 = vector.extract_strided_slice %6 {offsets = [0, 2], sizes = [16, 144], strides = [1, 1]} : vector<16x182xbf16> to vector<16x144xbf16>
    %19 = vector.extract_strided_slice %4 {offsets = [2, 0, 0], sizes = [1, 8, 16], strides = [1, 1, 1]} : vector<9x8x16xbf16> to vector<1x8x16xbf16>
    %20 = vector.shape_cast %19 : vector<1x8x16xbf16> to vector<8x16xbf16>
    %cst_9 = arith.constant dense<0.000000e+00> : vector<8x144xf32>
    %21 = tpu.matmul %20, %18, %cst_9 {dimension_numbers = #tpu.dot_dimension_numbers<[1], [0], [0], [1], [0, 0, 1, 1], [], []>} : vector<8x16xbf16>, vector<16x144xbf16>, vector<8x144xf32> -> vector<8x144xf32>
    %22 = arith.addf %17, %21 : vector<8x144xf32>
    %23 = vector.extract_strided_slice %6 {offsets = [0, 18], sizes = [16, 144], strides = [1, 1]} : vector<16x182xbf16> to vector<16x144xbf16>
    %24 = vector.extract_strided_slice %4 {offsets = [3, 0, 0], sizes = [1, 8, 16], strides = [1, 1, 1]} : vector<9x8x16xbf16> to vector<1x8x16xbf16>
    %25 = vector.shape_cast %24 : vector<1x8x16xbf16> to vector<8x16xbf16>
    %cst_10 = arith.constant dense<0.000000e+00> : vector<8x144xf32>
    %26 = tpu.matmul %25, %23, %cst_10 {dimension_numbers = #tpu.dot_dimension_numbers<[1], [0], [0], [1], [0, 0, 1, 1], [], []>} : vector<8x16xbf16>, vector<16x144xbf16>, vector<8x144xf32> -> vector<8x144xf32>
    %27 = arith.addf %22, %26 : vector<8x144xf32>
    %28 = vector.extract_strided_slice %6 {offsets = [0, 19], sizes = [16, 144], strides = [1, 1]} : vector<16x182xbf16> to vector<16x144xbf16>
    %29 = vector.extract_strided_slice %4 {offsets = [4, 0, 0], sizes = [1, 8, 16], strides = [1, 1, 1]} : vector<9x8x16xbf16> to vector<1x8x16xbf16>
    %30 = vector.shape_cast %29 : vector<1x8x16xbf16> to vector<8x16xbf16>
    %cst_11 = arith.constant dense<0.000000e+00> : vector<8x144xf32>
    %31 = tpu.matmul %30, %28, %cst_11 {dimension_numbers = #tpu.dot_dimension_numbers<[1], [0], [0], [1], [0, 0, 1, 1], [], []>} : vector<8x16xbf16>, vector<16x144xbf16>, vector<8x144xf32> -> vector<8x144xf32>
    %32 = arith.addf %27, %31 : vector<8x144xf32>
    %33 = vector.extract_strided_slice %6 {offsets = [0, 20], sizes = [16, 144], strides = [1, 1]} : vector<16x182xbf16> to vector<16x144xbf16>
    %34 = vector.extract_strided_slice %4 {offsets = [5, 0, 0], sizes = [1, 8, 16], strides = [1, 1, 1]} : vector<9x8x16xbf16> to vector<1x8x16xbf16>
    %35 = vector.shape_cast %34 : vector<1x8x16xbf16> to vector<8x16xbf16>
    %cst_12 = arith.constant dense<0.000000e+00> : vector<8x144xf32>
    %36 = tpu.matmul %35, %33, %cst_12 {dimension_numbers = #tpu.dot_dimension_numbers<[1], [0], [0], [1], [0, 0, 1, 1], [], []>} : vector<8x16xbf16>, vector<16x144xbf16>, vector<8x144xf32> -> vector<8x144xf32>
    %37 = arith.addf %32, %36 : vector<8x144xf32>
    %38 = vector.extract_strided_slice %6 {offsets = [0, 36], sizes = [16, 144], strides = [1, 1]} : vector<16x182xbf16> to vector<16x144xbf16>
    %39 = vector.extract_strided_slice %4 {offsets = [6, 0, 0], sizes = [1, 8, 16], strides = [1, 1, 1]} : vector<9x8x16xbf16> to vector<1x8x16xbf16>
    %40 = vector.shape_cast %39 : vector<1x8x16xbf16> to vector<8x16xbf16>
    %cst_13 = arith.constant dense<0.000000e+00> : vector<8x144xf32>
    %41 = tpu.matmul %40, %38, %cst_13 {dimension_numbers = #tpu.dot_dimension_numbers<[1], [0], [0], [1], [0, 0, 1, 1], [], []>} : vector<8x16xbf16>, vector<16x144xbf16>, vector<8x144xf32> -> vector<8x144xf32>
    %42 = arith.addf %37, %41 : vector<8x144xf32>
    %43 = vector.extract_strided_slice %6 {offsets = [0, 37], sizes = [16, 144], strides = [1, 1]} : vector<16x182xbf16> to vector<16x144xbf16>
    %44 = vector.extract_strided_slice %4 {offsets = [7, 0, 0], sizes = [1, 8, 16], strides = [1, 1, 1]} : vector<9x8x16xbf16> to vector<1x8x16xbf16>
    %45 = vector.shape_cast %44 : vector<1x8x16xbf16> to vector<8x16xbf16>
    %cst_14 = arith.constant dense<0.000000e+00> : vector<8x144xf32>
    %46 = tpu.matmul %45, %43, %cst_14 {dimension_numbers = #tpu.dot_dimension_numbers<[1], [0], [0], [1], [0, 0, 1, 1], [], []>} : vector<8x16xbf16>, vector<16x144xbf16>, vector<8x144xf32> -> vector<8x144xf32>
    %47 = arith.addf %42, %46 : vector<8x144xf32>
    %48 = vector.extract_strided_slice %6 {offsets = [0, 38], sizes = [16, 144], strides = [1, 1]} : vector<16x182xbf16> to vector<16x144xbf16>
    %49 = vector.extract_strided_slice %4 {offsets = [8, 0, 0], sizes = [1, 8, 16], strides = [1, 1, 1]} : vector<9x8x16xbf16> to vector<1x8x16xbf16>
    %50 = vector.shape_cast %49 : vector<1x8x16xbf16> to vector<8x16xbf16>
    %cst_15 = arith.constant dense<0.000000e+00> : vector<8x144xf32>
    %51 = tpu.matmul %50, %48, %cst_15 {dimension_numbers = #tpu.dot_dimension_numbers<[1], [0], [0], [1], [0, 0, 1, 1], [], []>} : vector<8x16xbf16>, vector<16x144xbf16>, vector<8x144xf32> -> vector<8x144xf32>
    %52 = arith.addf %47, %51 : vector<8x144xf32>
    %c0_16 = arith.constant 0 : index
    %53 = memref.load %arg7[%c0_16] : memref<1xf32, #tpu.memory_space<smem>>
    %c0_17 = arith.constant 0 : index
    %c0_18 = arith.constant 0 : index
    %c0_19 = arith.constant 0 : index
    %c0_20 = arith.constant 0 : index
    %54 = vector.load %arg5[%c0_17, %c0_18, %c0_19, %c0_20] : memref<1x1x1x144xf32, #tpu.memory_space<vmem>>, vector<1x1x1x144xf32>
    %55 = vector.shape_cast %54 : vector<1x1x1x144xf32> to vector<1x144xf32>
    %56 = vector.broadcast %53 : f32 to vector<1x144xf32>
    %57 = arith.mulf %56, %55 : vector<1x144xf32>
    %58 = vector.broadcast %57 : vector<1x144xf32> to vector<8x144xf32>
    %59 = arith.addf %52, %58 : vector<8x144xf32>
    %c0_21 = arith.constant 0 : index
    %c0_22 = arith.constant 0 : index
    %60 = vector.load %arg6[%c0_21, %c0_22] : memref<8x1xf32, #tpu.memory_space<vmem>>, vector<8x1xf32>
    %61 = vector.broadcast %60 : vector<8x1xf32> to vector<8x144xf32>
    %62 = arith.addf %59, %61 : vector<8x144xf32>
    %cst_23 = arith.constant 0.000000e+00 : f32
    %63 = vector.broadcast %cst_23 : f32 to vector<8x144xf32>
    %64 = arith.cmpf oge, %62, %63 : vector<8x144xf32>
    %cst_24 = arith.constant 2.000000e-01 : f32
    %65 = vector.broadcast %cst_24 : f32 to vector<8x144xf32>
    %66 = arith.mulf %65, %62 : vector<8x144xf32>
    %67 = arith.select %64, %62, %66 : vector<8x144xi1>, vector<8x144xf32>
    %cst_25 = arith.constant 1.41421354 : f32
    %68 = vector.broadcast %cst_25 : f32 to vector<8x144xf32>
    %69 = arith.mulf %67, %68 : vector<8x144xf32>
    %c0_26 = arith.constant 0 : index
    %c0_27 = arith.constant 0 : index
    %c0_28 = arith.constant 0 : index
    %c0_29 = arith.constant 0 : index
    %70 = vector.load %arg8[%c0_26, %c0_27, %c0_28, %c0_29] : memref<1x1x8x144xf32, #tpu.memory_space<vmem>>, vector<1x1x8x144xf32>
    %71 = vector.shape_cast %70 : vector<1x1x8x144xf32> to vector<8x144xf32>
    %72 = vector.shape_cast %69 : vector<8x144xf32> to vector<1x1x8x144xf32>
    tpu.vector_store %arg8[%c0_26, %c0_27, %c0_28, %c0_29], %72 {strides = array<i32>} : memref<1x1x8x144xf32, #tpu.memory_space<vmem>>, vector<1x1x8x144xf32>,
    return
  }
  func.func @transform_0(%arg0: i32, %arg1: i32) -> (i32, i32, i32) {
    %c0_i32 = arith.constant 0 : i32
    %c0_i32_0 = arith.constant 0 : i32
    %c0_i32_1 = arith.constant 0 : i32
    %c0_i32_2 = arith.constant 0 : i32
    return %c0_i32, %c0_i32_0, %c0_i32_1 : i32, i32, i32
  }
  func.func @transform_1(%arg0: i32, %arg1: i32) -> (i32, i32, i32) {
    %c0_i32 = arith.constant 0 : i32
    %c0_i32_0 = arith.constant 0 : i32
    %c0_i32_1 = arith.constant 0 : i32
    return %arg0, %c0_i32, %c0_i32_0 : i32, i32, i32
  }
  func.func @transform_2(%arg0: i32, %arg1: i32) -> (i32, i32, i32, i32) {
    %c0_i32 = arith.constant 0 : i32
    %c0_i32_0 = arith.constant 0 : i32
    %c0_i32_1 = arith.constant 0 : i32
    return %arg0, %arg1, %c0_i32, %c0_i32_0 : i32, i32, i32, i32
  }
  func.func @transform_3(%arg0: i32, %arg1: i32) -> (i32, i32, i32, i32) {
    %c0_i32 = arith.constant 0 : i32
    %c0_i32_0 = arith.constant 0 : i32
    %c0_i32_1 = arith.constant 0 : i32
    return %arg0, %arg1, %c0_i32, %c0_i32_0 : i32, i32, i32, i32
  }
  func.func @transform_4(%arg0: i32, %arg1: i32) -> (i32, i32) {
    %c0_i32 = arith.constant 0 : i32
    %c0_i32_0 = arith.constant 0 : i32
    %c0_i32_1 = arith.constant 0 : i32
    return %c0_i32, %c0_i32_0 : i32, i32
  }
  func.func @transform_5(%arg0: i32, %arg1: i32) -> i32 {
    %c0_i32 = arith.constant 0 : i32
    %c0_i32_0 = arith.constant 0 : i32
    return %c0_i32 : i32
  }
  func.func @transform_6(%arg0: i32, %arg1: i32) -> (i32, i32, i32, i32) {
    %c0_i32 = arith.constant 0 : i32
    %c0_i32_0 = arith.constant 0 : i32
    %c0_i32_1 = arith.constant 0 : i32
    return %arg0, %arg1, %c0_i32, %c0_i32_0 : i32, i32, i32, i32
  }
}

</mosaic_0001>

<llo_original>
// kernel: tpu_custom_call.1
$region0: #{tpu_custom_call.1}
  #allocation0 [shape = 'u32[]', space=smem, size = 0x4, offset = 0x4, fixed_abs, tag = 'smem constant byte address 0x4 - core index']
  #allocation1 [shape = 'u32[144,128]{1,0:T(1,128)}', space=vmem, size = 0x12000, scoped, tag = 'internal scratch']
  #allocation2 [shape = 'f32[9,8,16]{2,1,0:T(8,128)}', space=vmem, size = 0x9000, scoped, tag = 'scratch operand']
  #allocation3 [shape = 'f32[1]{0:T(128)S(6)}', space=smem, size = 0x200, scoped, tag = 'scoped memory for tpu_custom_call.1']
  %s0 = inlined_call_operand.hbm [shape: f32[9,8,16], index: 0, kind: input, shape index: {}]
  %s1 = inlined_call_operand.hbm [shape: f32[2,1,16], index: 1, kind: input, shape index: {}]
  %s2 = inlined_call_operand.hbm [shape: bf16[2,2,16,182], index: 2, kind: input, shape index: {}]
  %s3 = inlined_call_operand.hbm [shape: f32[2,2,1,144], index: 3, kind: input, shape index: {}]
  %s4 = inlined_call_operand.hbm [shape: f32[8,1], index: 4, kind: input, shape index: {}]
  %s5 = inlined_call_operand.<no memory space> [shape: f32[1], index: 5, kind: input, shape index: {}]
  %s6 = inlined_call_operand.hbm [shape: f32[2,2,8,144], index: 6, kind: output, shape index: {}]
  %s7 = sld [smem:[#allocation0]]
  $region81: #{tpu_custom_call.1} parent=0
    _
  %s9 = ssub.s32 1, %s7
  %s10 = scalar_select 0, %s9, %s7
  %11 = sst [smem:[#allocation3]] %s5
  $region1: #{tpu_custom_call.1} parent=0
    #allocation4 [shape = 'u8[36864]{0}', space=vmem, size = 0x9000, scoped, tag = 'input window, operand 0, single buffered']
    #allocation5 [shape = 's32[2]{0}', space=sflag, size = 0x8, scoped, tag = 'scoped memory for tpu_custom_call.1']
    #allocation6 [shape = 's32[2]{0}', space=sflag, size = 0x8, scoped, tag = 'scoped memory for tpu_custom_call.1']
    #allocation7 [shape = 'u8[1024]{0}', space=vmem, size = 0x400, scoped, tag = 'input window, operand 1']
    #allocation8 [shape = 's32[2]{0}', space=sflag, size = 0x8, scoped, tag = 'scoped memory for tpu_custom_call.1']
    #allocation9 [shape = 'u8[16384]{0}', space=vmem, size = 0x4000, scoped, tag = 'input window, operand 2']
    #allocation10 [shape = 'u8[2048]{0}', space=vmem, size = 0x800, scoped, tag = 'input window, operand 3']
    #allocation11 [shape = 's32[2]{0}', space=sflag, size = 0x8, scoped, tag = 'scoped memory for tpu_custom_call.1']
    #allocation12 [shape = 'u8[4096]{0}', space=vmem, size = 0x1000, scoped, tag = 'input window, operand 4, single buffered']
    #allocation13 [shape = 'u8[16384]{0}', space=vmem, size = 0x4000, scoped, tag = 'output window, operand 0']
    %12 = vsyncpa [#allocation5], 0
    %13 = vsyncpa [#allocation8], 0
    %s14 = scalar_lea.sflag [#allocation8], 1
    %15 = vsyncpa %s14, 0
    %16 = vsyncpa [#allocation11], 0
    %s17 = scalar_lea.sflag [#allocation11], 1
    %18 = vsyncpa %s17, 0
    %19 = vsyncpa [#allocation6], 0
    %s20 = scalar_lea.sflag [#allocation6], 1
    %21 = vsyncpa %s20, 0
    loop: start=0, step=1, limit=6
    $region2: #{tpu_custom_call.1} parent=1 // loop_pre_header
      _
    $region3: #{tpu_custom_call.1} parent=1 // loop_header
      %s23 = sphi 0, %s27
      %p24 = scmp.ge.s32.totalorder %s23, 6
      %s30 = sphi 0, %s42
      %s31 = sphi 0, %s38
      %s32 = sphi 0, %s30
      %s33 = sphi 0, %s31
      %s34 = sphi 0, %s32
      %s35 = sphi 0, %s33
      %s43 = sphi 0, %s43
      %s45 = sphi 0, %s43
      %s46 = sphi 0, %s45
      %s60 = sphi 0, %s46
      %s66 = sphi 0, %s68
      %s69 = sphi 0, %s66
      %s70 = sphi 0, %s69
      %s86 = sphi 0, %s70
      %s94 = sphi 0, %s96
      %s97 = sphi 0, %s94
      %s98 = sphi 0, %s97
      %s114 = sphi 0, %s98
      %s122 = sphi 0, %s124
      %s125 = sphi 0, %s122
      %s126 = sphi 0, %s125
      %s142 = sphi 0, %s126
      %s146 = sphi 0, %s146
      %s148 = sphi 0, %s146
      %s149 = sphi 0, %s148
      %s163 = sphi 0, %s149
      %s167 = sphi 0, %s167
      %s169 = sphi 0, %s167
      %s170 = sphi 0, %s169
      %s184 = sphi 0, %s170
      %s192 = sphi 0, %s194
      %s195 = sphi 0, %s192
      %s196 = sphi 0, %s195
      %s212 = sphi 0, %s196
    $region4: #{tpu_custom_call.1} parent=1 // loop_header_branch
      %26 = sbr.rel (%p24) target = $region8
    $region5: #{tpu_custom_call.1} parent=1 // loop_body
      %s28 = ssub.s32 %s23, 1
      %s29 = ssub.s32 %s23, 2
      %s36 = sadd.s32 1, %s31
      %p37 = scmp.ge.s32.totalorder %s36, 2
      %s38 = scalar_select %p37, 0, %s36
      %s39 = sadd.s32 1, %s30
      %s40 = scalar_select %p37, %s39, %s30
      %p41 = scmp.ge.s32.totalorder %s40, 2
      %s42 = scalar_select %p41, 0, %s40
      %s44 = sadd.s32 %s43, 1
      %p47 = scmp.eq.s32.totalorder %s23, 3
      %p48 = scmp.ne.s32.totalorder %s43, %s45
      %p49 = scmp.eq.s32.totalorder %s23, 0
      %p50 = por %p48, %p49
      %p51 = scmp.ne.s32.totalorder %s43, %s45
      %p52 = scmp.eq.s32.totalorder %s28, 3
      %p53 = por %p51, %p52
      %p54 = scmp.ne.s32.totalorder %s45, %s46
      %p55 = scmp.eq.s32.totalorder %s28, 0
      %p56 = por %p54, %p55
      %p57 = scmp.ne.s32.totalorder %s45, %s46
      %p58 = scmp.eq.s32.totalorder %s29, 3
      %p59 = por %p57, %p58
      %p61 = scmp.ne.s32.totalorder %s46, %s60
      %p62 = scmp.eq.s32.totalorder %s29, 0
      %p63 = por %p61, %p62
      %s64 = ssub.s32 %s30, %s42
      %p65 = scmp.eq.s32.totalorder %s64, 0
      %s67 = sadd.s32 %s66, 1
      %s68 = scalar_select %p65, %s66, %s67
      %p71 = pneg %p65
      %p72 = scmp.eq.s32.totalorder %s23, 3
      %p73 = por %p71, %p72
      %p74 = scmp.ne.s32.totalorder %s66, %s69
      %p75 = scmp.eq.s32.totalorder %s23, 0
      %p76 = por %p74, %p75
      %p77 = scmp.ne.s32.totalorder %s66, %s69
      %p78 = scmp.eq.s32.totalorder %s28, 3
      %p79 = por %p77, %p78
      %p80 = scmp.ne.s32.totalorder %s69, %s70
      %p81 = scmp.eq.s32.totalorder %s28, 0
      %p82 = por %p80, %p81
      %p83 = scmp.ne.s32.totalorder %s69, %s70
      %p84 = scmp.eq.s32.totalorder %s29, 3
      %p85 = por %p83, %p84
      %p87 = scmp.ne.s32.totalorder %s70, %s86
      %p88 = scmp.eq.s32.totalorder %s29, 0
      %p89 = por %p87, %p88
      %s90 = ssub.s32 %s30, %s42
      %s91 = ssub.s32 %s31, %s38
      %s92 = sor.u32 %s90, %s91
      %p93 = scmp.eq.s32.totalorder %s92, 0
      %s95 = sadd.s32 %s94, 1
      %s96 = scalar_select %p93, %s94, %s95
      %p99 = pneg %p93
      %p100 = scmp.eq.s32.totalorder %s23, 3
      %p101 = por %p99, %p100
      %p102 = scmp.ne.s32.totalorder %s94, %s97
      %p103 = scmp.eq.s32.totalorder %s23, 0
      %p104 = por %p102, %p103
      %p105 = scmp.ne.s32.totalorder %s94, %s97
      %p106 = scmp.eq.s32.totalorder %s28, 3
      %p107 = por %p105, %p106
      %p108 = scmp.ne.s32.totalorder %s97, %s98
      %p109 = scmp.eq.s32.totalorder %s28, 0
      %p110 = por %p108, %p109
      %p111 = scmp.ne.s32.totalorder %s97, %s98
      %p112 = scmp.eq.s32.totalorder %s29, 3
      %p113 = por %p111, %p112
      %p115 = scmp.ne.s32.totalorder %s98, %s114
      %p116 = scmp.eq.s32.totalorder %s29, 0
      %p117 = por %p115, %p116
      %s118 = ssub.s32 %s30, %s42
      %s119 = ssub.s32 %s31, %s38
      %s120 = sor.u32 %s118, %s119
      %p121 = scmp.eq.s32.totalorder %s120, 0
      %s123 = sadd.s32 %s122, 1
      %s124 = scalar_select %p121, %s122, %s123
      %p127 = pneg %p121
      %p128 = scmp.eq.s32.totalorder %s23, 3
      %p129 = por %p127, %p128
      %p130 = scmp.ne.s32.totalorder %s122, %s125
      %p131 = scmp.eq.s32.totalorder %s23, 0
      %p132 = por %p130, %p131
      %p133 = scmp.ne.s32.totalorder %s122, %s125
      %p134 = scmp.eq.s32.totalorder %s28, 3
      %p135 = por %p133, %p134
      %p136 = scmp.ne.s32.totalorder %s125, %s126
      %p137 = scmp.eq.s32.totalorder %s28, 0
      %p138 = por %p136, %p137
      %p139 = scmp.ne.s32.totalorder %s125, %s126
      %p140 = scmp.eq.s32.totalorder %s29, 3
      %p141 = por %p139, %p140
      %p143 = scmp.ne.s32.totalorder %s126, %s142
      %p144 = scmp.eq.s32.totalorder %s29, 0
      %p145 = por %p143, %p144
      %s147 = sadd.s32 %s146, 1
      %p150 = scmp.eq.s32.totalorder %s23, 3
      %p151 = scmp.ne.s32.totalorder %s146, %s148
      %p152 = scmp.eq.s32.totalorder %s23, 0
      %p153 = por %p151, %p152
      %p154 = scmp.ne.s32.totalorder %s146, %s148
      %p155 = scmp.eq.s32.totalorder %s28, 3
      %p156 = por %p154, %p155
      %p157 = scmp.ne.s32.totalorder %s148, %s149
      %p158 = scmp.eq.s32.totalorder %s28, 0
      %p159 = por %p157, %p158
      %p160 = scmp.ne.s32.totalorder %s148, %s149
      %p161 = scmp.eq.s32.totalorder %s29, 3
      %p162 = por %p160, %p161
      %p164 = scmp.ne.s32.totalorder %s149, %s163
      %p165 = scmp.eq.s32.totalorder %s29, 0
      %p166 = por %p164, %p165
      %s168 = sadd.s32 %s167, 1
      %p171 = scmp.eq.s32.totalorder %s23, 3
      %p172 = scmp.ne.s32.totalorder %s167, %s169
      %p173 = scmp.eq.s32.totalorder %s23, 0
      %p174 = por %p172, %p173
      %p175 = scmp.ne.s32.totalorder %s167, %s169
      %p176 = scmp.eq.s32.totalorder %s28, 3
      %p177 = por %p175, %p176
      %p178 = scmp.ne.s32.totalorder %s169, %s170
      %p179 = scmp.eq.s32.totalorder %s28, 0
      %p180 = por %p178, %p179
      %p181 = scmp.ne.s32.totalorder %s169, %s170
      %p182 = scmp.eq.s32.totalorder %s29, 3
      %p183 = por %p181, %p182
      %p185 = scmp.ne.s32.totalorder %s170, %s184
      %p186 = scmp.eq.s32.totalorder %s29, 0
      %p187 = por %p185, %p186
      %s188 = ssub.s32 %s30, %s42
      %s189 = ssub.s32 %s31, %s38
      %s190 = sor.u32 %s188, %s189
      %p191 = scmp.eq.s32.totalorder %s190, 0
      %s193 = sadd.s32 %s192, 1
      %s194 = scalar_select %p191, %s192, %s193
      %p197 = pneg %p191
      %p198 = scmp.eq.s32.totalorder %s23, 3
      %p199 = por %p197, %p198
      %p200 = scmp.ne.s32.totalorder %s192, %s195
      %p201 = scmp.eq.s32.totalorder %s23, 0
      %p202 = por %p200, %p201
      %p203 = scmp.ne.s32.totalorder %s192, %s195
      %p204 = scmp.eq.s32.totalorder %s28, 3
      %p205 = por %p203, %p204
      %p206 = scmp.ne.s32.totalorder %s195, %s196
      %p207 = scmp.eq.s32.totalorder %s28, 0
      %p208 = por %p206, %p207
      %p209 = scmp.ne.s32.totalorder %s195, %s196
      %p210 = scmp.eq.s32.totalorder %s29, 3
      %p211 = por %p209, %p210
      %p213 = scmp.ne.s32.totalorder %s196, %s212
      %p214 = scmp.eq.s32.totalorder %s29, 0
      %p215 = por %p213, %p214
      %p216 = scmp.le.s32.totalorder 1, %s23
      %p217 = scmp.lt.s32.totalorder %s23, 5
      %p218 = pnand %p216, %p217
      %p219 = pneg %p218
      // Predicated region
      $region9: #{tpu_custom_call.1} parent=5 // pred_check
        _
      $region10: #{tpu_custom_call.1} parent=5 // pred_check_branch
        %221 = sbr.rel (%p218) target = $region12
      $region11: #{tpu_custom_call.1} parent=5 // pred_region
        %s222 = ssub.s32 %s23, 1
        // Predicated region
        $region13: #{tpu_custom_call.1} parent=11 // pred_check
          %p223 = pneg %p56
        $region14: #{tpu_custom_call.1} parent=11 // pred_check_branch
          %225 = sbr.rel (%p223) target = $region16
        $region15: #{tpu_custom_call.1} parent=11 // pred_region
          %s227 = ssub.s32 1152, 1152
          %228 = vsyncadd [#allocation5], %s227
          %s229 = sshll.u32 [#allocation4], 4
          %s230 = int_to_ptr.vmem [resolvable:$true] %s229
          %235 = dma.hbm_to_vmem [thread:$0]  %s0, 1152, %s230, [#allocation5], 128, 128, 8
        $region16: #{tpu_custom_call.1} parent=11 // pred_fallthru
          _
        // Predicated region
        $region17: #{tpu_custom_call.1} parent=11 // pred_check
          %p236 = pneg %p159
        $region18: #{tpu_custom_call.1} parent=11 // pred_check_branch
          %238 = sbr.rel (%p236) target = $region20
        $region19: #{tpu_custom_call.1} parent=11 // pred_region
          %s240 = ssub.s32 128, 128
          %241 = vsyncadd [#allocation11], %s240
          %s243 = sshll.u32 [#allocation12], 4
          %s244 = int_to_ptr.vmem [resolvable:$true] %s243
          %246 = dma.hbm_to_vmem [thread:$0]  %s4, 128, %s244, [#allocation11]
        $region20: #{tpu_custom_call.1} parent=11 // pred_fallthru
          _
        // Predicated region
        $region21: #{tpu_custom_call.1} parent=11 // pred_check
          %p247 = pneg %p180
        $region22: #{tpu_custom_call.1} parent=11 // pred_check_branch
          %249 = sbr.rel (%p247) target = $region24
        $region23: #{tpu_custom_call.1} parent=11 // pred_region
          _
        $region24: #{tpu_custom_call.1} parent=11 // pred_fallthru
          _
      $region12: #{tpu_custom_call.1} parent=5 // pred_fallthru
        _
      %p250 = scmp.lt.s32.totalorder %s23, 4
      // Predicated region
      $region25: #{tpu_custom_call.1} parent=5 // pred_check
        %p251 = pneg %p250
      $region26: #{tpu_custom_call.1} parent=5 // pred_check_branch
        %253 = sbr.rel (%p251) target = $region28
      $region27: #{tpu_custom_call.1} parent=5 // pred_region
        // Predicated region
        $region29: #{tpu_custom_call.1} parent=27 // pred_check
          %p254 = pneg %p76
        $region30: #{tpu_custom_call.1} parent=27 // pred_check_branch
          %256 = sbr.rel (%p254) target = $region32
        $region31: #{tpu_custom_call.1} parent=27 // pred_region
          %s257 = sand.u32 %s23, 1
          %s258 = scalar_lea.sflag [#allocation8], %s257
          %s259 = sand.u32 %s66, 1
          %s260 = scalar_lea.vmem [#allocation7], %s259
          %s262 = ssub.s32 16, 16
          %263 = vsyncadd %s258, %s262
          %s264 = smul.addr %s30, 16
          %s265 = scalar_lea.hbm %s1, %s264
          %s267 = sshll.u32 %s260, 4
          %s268 = int_to_ptr.vmem [resolvable:$true] %s267
          %270 = dma.hbm_to_vmem [thread:$0]  %s265, 16, %s268, %s258
        $region32: #{tpu_custom_call.1} parent=27 // pred_fallthru
          _
        // Predicated region
        $region33: #{tpu_custom_call.1} parent=27 // pred_check
          %p271 = pneg %p104
        $region34: #{tpu_custom_call.1} parent=27 // pred_check_branch
          %273 = sbr.rel (%p271) target = $region36
        $region35: #{tpu_custom_call.1} parent=27 // pred_region
          %s274 = sand.u32 %s23, 1
          %s275 = scalar_lea.sflag [#allocation8], %s274
          %s276 = sand.u32 %s94, 1
          %s277 = smul.addr %s276, 16
          %s278 = scalar_lea.vmem [#allocation9], %s277
          %s280 = ssub.s32 256, 256
          %281 = vsyncadd %s275, %s280
          %s282 = smul.addr %s31, 4
          %s283 = smul.addr %s30, 8
          %s284 = sadd.s32 %s282, %s283
          %s285 = smul.addr %s284, 64
          %s286 = scalar_lea.hbm %s2, %s285
          %s287 = sshll.u32 %s278, 4
          %s288 = int_to_ptr.vmem [resolvable:$true] %s287
          %293 = dma.hbm_to_vmem [thread:$0]  %s286, 256, %s288, %s275, 128, 128, 8
        $region36: #{tpu_custom_call.1} parent=27 // pred_fallthru
          _
        // Predicated region
        $region37: #{tpu_custom_call.1} parent=27 // pred_check
          %p294 = pneg %p132
        $region38: #{tpu_custom_call.1} parent=27 // pred_check_branch
          %296 = sbr.rel (%p294) target = $region40
        $region39: #{tpu_custom_call.1} parent=27 // pred_region
          %s297 = sand.u32 %s23, 1
          %s298 = scalar_lea.sflag [#allocation11], %s297
          %s299 = sand.u32 %s122, 1
          %s300 = smul.addr %s299, 2
          %s301 = scalar_lea.vmem [#allocation10], %s300
          %s303 = ssub.s32 32, 32
          %304 = vsyncadd %s298, %s303
          %s305 = smul.addr %s31, 2
          %s306 = smul.addr %s30, 4
          %s307 = sadd.s32 %s305, %s306
          %s308 = smul.addr %s307, 16
          %s309 = scalar_lea.hbm %s3, %s308
          %s311 = sshll.u32 %s301, 4
          %s312 = int_to_ptr.vmem [resolvable:$true] %s311
          %314 = dma.hbm_to_vmem [thread:$0]  %s309, 32, %s312, %s298
        $region40: #{tpu_custom_call.1} parent=27 // pred_fallthru
          _
      $region28: #{tpu_custom_call.1} parent=5 // pred_fallthru
        _
      %p315 = scmp.le.s32.totalorder 1, %s23
      %p316 = scmp.lt.s32.totalorder %s23, 5
      %p317 = pnand %p315, %p316
      %p318 = pneg %p317
      // Predicated region
      $region41: #{tpu_custom_call.1} parent=5 // pred_check
        _
      $region42: #{tpu_custom_call.1} parent=5 // pred_check_branch
        %320 = sbr.rel (%p317) target = $region44
      $region43: #{tpu_custom_call.1} parent=5 // pred_region
        %s321 = ssub.s32 %s23, 1
        // Predicated region
        $region45: #{tpu_custom_call.1} parent=43 // pred_check
          %p322 = pneg %p56
        $region46: #{tpu_custom_call.1} parent=43 // pred_check_branch
          %324 = sbr.rel (%p322) target = $region48
        $region47: #{tpu_custom_call.1} parent=43 // pred_region
          %325 = dma.done [#allocation5], 1152
        $region48: #{tpu_custom_call.1} parent=43 // pred_fallthru
          _
        %s326 = sand.u32 %s28, 1
        %s327 = scalar_lea.sflag [#allocation8], %s326
        %s328 = sand.u32 %s69, 1
        %s329 = scalar_lea.vmem [#allocation7], %s328
        // Predicated region
        $region49: #{tpu_custom_call.1} parent=43 // pred_check
          %p330 = pneg %p82
        $region50: #{tpu_custom_call.1} parent=43 // pred_check_branch
          %332 = sbr.rel (%p330) target = $region52
        $region51: #{tpu_custom_call.1} parent=43 // pred_region
          %333 = dma.done %s327, 16
        $region52: #{tpu_custom_call.1} parent=43 // pred_fallthru
          _
        %s334 = sand.u32 %s28, 1
        %s335 = scalar_lea.sflag [#allocation8], %s334
        %s336 = sand.u32 %s97, 1
        %s337 = smul.addr %s336, 16
        %s338 = scalar_lea.vmem [#allocation9], %s337
        // Predicated region
        $region53: #{tpu_custom_call.1} parent=43 // pred_check
          %p339 = pneg %p110
        $region54: #{tpu_custom_call.1} parent=43 // pred_check_branch
          %341 = sbr.rel (%p339) target = $region56
        $region55: #{tpu_custom_call.1} parent=43 // pred_region
          %342 = dma.done %s335, 256
        $region56: #{tpu_custom_call.1} parent=43 // pred_fallthru
          _
        %s343 = sand.u32 %s28, 1
        %s344 = scalar_lea.sflag [#allocation11], %s343
        %s345 = sand.u32 %s125, 1
        %s346 = smul.addr %s345, 2
        %s347 = scalar_lea.vmem [#allocation10], %s346
        // Predicated region
        $region57: #{tpu_custom_call.1} parent=43 // pred_check
          %p348 = pneg %p138
        $region58: #{tpu_custom_call.1} parent=43 // pred_check_branch
          %350 = sbr.rel (%p348) target = $region60
        $region59: #{tpu_custom_call.1} parent=43 // pred_region
          %351 = dma.done %s344, 32
        $region60: #{tpu_custom_call.1} parent=43 // pred_fallthru
          _
        // Predicated region
        $region61: #{tpu_custom_call.1} parent=43 // pred_check
          %p352 = pneg %p159
        $region62: #{tpu_custom_call.1} parent=43 // pred_check_branch
          %354 = sbr.rel (%p352) target = $region64
        $region63: #{tpu_custom_call.1} parent=43 // pred_region
          %355 = dma.done [#allocation11], 128
        $region64: #{tpu_custom_call.1} parent=43 // pred_fallthru
          _
        %p356 = pneg %p56
        %p357 = pneg %p53
        %s358 = sand.u32 %s28, 1
        %s359 = scalar_lea.sflag [#allocation8], %s358
        %s360 = sand.u32 %s69, 1
        %s361 = scalar_lea.vmem [#allocation7], %s360
        %p362 = pneg %p82
        %p363 = pneg %p79
        %s364 = sand.u32 %s28, 1
        %s365 = scalar_lea.sflag [#allocation8], %s364
        %s366 = sand.u32 %s97, 1
        %s367 = smul.addr %s366, 16
        %s368 = scalar_lea.vmem [#allocation9], %s367
        %p369 = pneg %p110
        %p370 = pneg %p107
        %s371 = sand.u32 %s28, 1
        %s372 = scalar_lea.sflag [#allocation11], %s371
        %s373 = sand.u32 %s125, 1
        %s374 = smul.addr %s373, 2
        %s375 = scalar_lea.vmem [#allocation10], %s374
        %p376 = pneg %p138
        %p377 = pneg %p135
        %p378 = pneg %p159
        %p379 = pneg %p156
        %p380 = pneg %p180
        %p381 = pneg %p177
        %p382 = pneg %p208
        %p383 = pneg %p205
        %s384 = sand.u32 %s195, 1
        %s385 = scalar_lea.sflag [#allocation6], %s384
        %s386 = sand.u32 %s195, 1
        %s387 = smul.addr %s386, 16
        %s388 = scalar_lea.vmem [#allocation13], %s387
        %p390 = scmp.eq.s32.totalorder %s33, 0
        // Predicated region
        $region65: #{tpu_custom_call.1} parent=43 // pred_check
          %p391 = pneg %p390
        $region66: #{tpu_custom_call.1} parent=43 // pred_check_branch
          %393 = sbr.rel (%p391) target = $region68
        $region67: #{tpu_custom_call.1} parent=43 // pred_region
          %v394 = vld [vmem:[#allocation4] sm:$0xff]
          %v395 = vld [vmem:[#allocation4 + $0x8] sm:$0xff]
          %v396 = vld [vmem:[#allocation4 + $0x10] sm:$0xff]
          %v397 = vld [vmem:[#allocation4 + $0x18] sm:$0xff]
          %v398 = vld [vmem:[#allocation4 + $0x20] sm:$0xff]
          %v399 = vld [vmem:[#allocation4 + $0x28] sm:$0xff]
          %v400 = vld [vmem:[#allocation4 + $0x30] sm:$0xff]
          %v401 = vld [vmem:[#allocation4 + $0x38] sm:$0xff]
          %v402 = vld [vmem:[#allocation4 + $0x40] sm:$0xff]
          %v403 = vld [vmem:[%s329] sm:$0x1]
          %v405 = vlaneseq
          %v406 = vshrl.u32 %v405, 7
          %v407 = vsub.s32 0, %v406
          %v408 = vrot.slane %v403, %v407
          %v410 = vmul.f32 %v394, %v408
          %v411 = vmul.f32 %v395, %v408
          %v412 = vmul.f32 %v396, %v408
          %v413 = vmul.f32 %v397, %v408
          %v414 = vmul.f32 %v398, %v408
          %v415 = vmul.f32 %v399, %v408
          %v416 = vmul.f32 %v400, %v408
          %v417 = vmul.f32 %v401, %v408
          %v418 = vmul.f32 %v402, %v408
          %v419 = vmul.f32 %v410, %v410
          %v420 = vmul.f32 %v411, %v411
          %v421 = vmul.f32 %v412, %v412
          %v422 = vmul.f32 %v413, %v413
          %v423 = vmul.f32 %v414, %v414
          %v424 = vmul.f32 %v415, %v415
          %v425 = vmul.f32 %v416, %v416
          %v426 = vmul.f32 %v417, %v417
          %v427 = vmul.f32 %v418, %v418
          %vm428 = vcmask 130048
          %v429 = vsel %vm428, %v419, 0.0
          %v430 = vsel %vm428, %v420, 0.0
          %v431 = vadd.f32 %v429, %v430
          %v432 = vsel %vm428, %v421, 0.0
          %v433 = vadd.f32 %v431, %v432
          %v434 = vsel %vm428, %v422, 0.0
          %v435 = vadd.f32 %v433, %v434
          %v436 = vsel %vm428, %v423, 0.0
          %v437 = vadd.f32 %v435, %v436
          %v438 = vsel %vm428, %v424, 0.0
          %v439 = vadd.f32 %v437, %v438
          %v440 = vsel %vm428, %v425, 0.0
          %v441 = vadd.f32 %v439, %v440
          %v442 = vsel %vm428, %v426, 0.0
          %v443 = vadd.f32 %v441, %v442
          %v444 = vsel %vm428, %v427, 0.0
          %v445 = vadd.f32 %v443, %v444
          %v446 = vsel %vm428, %v445, 0.0
          %447 = vadd.xlane.f32.xlu0 %v446
          %v448 = vpop.xlane.xlu0 %447
          %v449 = vadd.f32 %v448, 1e-08
          %v450 = vrsqrt.pop %v449
          %v451 = vmul.f32 %v410, %v450
          %v452 = vmul.f32 %v411, %v450
          %v453 = vmul.f32 %v412, %v450
          %v454 = vmul.f32 %v413, %v450
          %v455 = vmul.f32 %v414, %v450
          %v456 = vmul.f32 %v415, %v450
          %v457 = vmul.f32 %v416, %v450
          %v458 = vmul.f32 %v417, %v450
          %v459 = vmul.f32 %v418, %v450
          %460 = vst.msk [vmem:[#allocation2] sm:$0xff] %vm428, %v451
          %461 = vst.msk [vmem:[#allocation2 + $0x8] sm:$0xff] %vm428, %v452
          %462 = vst.msk [vmem:[#allocation2 + $0x10] sm:$0xff] %vm428, %v453
          %463 = vst.msk [vmem:[#allocation2 + $0x18] sm:$0xff] %vm428, %v454
          %464 = vst.msk [vmem:[#allocation2 + $0x20] sm:$0xff] %vm428, %v455
          %465 = vst.msk [vmem:[#allocation2 + $0x28] sm:$0xff] %vm428, %v456
          %466 = vst.msk [vmem:[#allocation2 + $0x30] sm:$0xff] %vm428, %v457
          %467 = vst.msk [vmem:[#allocation2 + $0x38] sm:$0xff] %vm428, %v458
          %468 = vst.msk [vmem:[#allocation2 + $0x40] sm:$0xff] %vm428, %v459
        $region68: #{tpu_custom_call.1} parent=43 // pred_fallthru
          _
        %v469 = vld [vmem:[#allocation2] sm:$0xff]
        %v470 = vld [vmem:[#allocation2 + $0x8] sm:$0xff]
        %v471 = vld [vmem:[#allocation2 + $0x10] sm:$0xff]
        %v472 = vld [vmem:[#allocation2 + $0x18] sm:$0xff]
        %v473 = vld [vmem:[#allocation2 + $0x20] sm:$0xff]
        %v474 = vld [vmem:[#allocation2 + $0x28] sm:$0xff]
        %v475 = vld [vmem:[#allocation2 + $0x30] sm:$0xff]
        %v476 = vld [vmem:[#allocation2 + $0x38] sm:$0xff]
        %v477 = vld [vmem:[#allocation2 + $0x40] sm:$0xff]
        %v478 = vpack.c.bf16 %v469, %v469
        %v479 = vpack.c.bf16 %v470, %v470
        %v480 = vpack.c.bf16 %v471, %v471
        %v481 = vpack.c.bf16 %v472, %v472
        %v482 = vpack.c.bf16 %v473, %v473
        %v483 = vpack.c.bf16 %v474, %v474
        %v484 = vpack.c.bf16 %v475, %v475
        %v485 = vpack.c.bf16 %v476, %v476
        %v486 = vpack.c.bf16 %v477, %v477
        %v487 = vld [vmem:[%s338] sm:$0xff]
        %v488 = vld [vmem:[%s338 + $0x8] sm:$0xff]
        %v491 = vunpack.c.l.b16 %v487
        %v492 = vunpack.c.h.b16 %v487
        %v493 = vunpack.c.l.b16 %v488
        %v494 = vunpack.c.h.b16 %v488
        %v495 = vpack.c.b16 %v493, %v491
        %v496 = vpack.c.b16 %v494, %v492
        %497 = vrot.lane.b32.xlu0 %v495, 127
        %v498 = vpop.permute.xlu0 %497
        %499 = vrot.lane.b32.xlu0 %v496, 127
        %v500 = vpop.permute.xlu0 %499
        %vm501 = vcmask 1039360
        %v502 = vsel %vm501, %v498, %v500
        %vm505 = vcmask 130048
        %v507 = vsel %vm505, %v479, 0
        %509 = vmatprep.subr.bf16.mxu0 %v500
        %510 = vmatpush1.bf16.msra.mxu0 %v502
        %511 = vmatprep.subr.bf16.mxu0 0
        %512 = vmatpush1.bf16.msra.mxu0 0
        %513 = vmatprep.subr.bf16.mxu0 0
        %514 = vmatpush1.bf16.msra.mxu0 0
        %515 = vmatprep.subr.bf16.mxu0 0
        %516 = vmatpush1.bf16.msra.mxu0 0
        %517 = vmatprep.subr.bf16.mxu0 0
        %518 = vmatpush1.bf16.msra.mxu0 0
        %519 = vmatprep.subr.bf16.mxu0 0
        %520 = vmatpush1.bf16.msra.mxu0 0
        %521 = vmatprep.subr.bf16.mxu0 0
        %522 = vmatpush1.bf16.msra.mxu0 0
        %523 = vmatprep.subr.bf16.mxu0 0
        %524 = vmatpush1.bf16.msra.mxu0 0
        %525 = vmatprep.subr.bf16.mxu0 0
        %526 = vmatpush1.bf16.msra.mxu0 0
        %527 = vmatprep.subr.bf16.mxu0 0
        %528 = vmatpush1.bf16.msra.mxu0 0
        %529 = vmatprep.subr.bf16.mxu0 0
        %530 = vmatpush1.bf16.msra.mxu0 0
        %531 = vmatprep.subr.bf16.mxu0 0
        %532 = vmatpush1.bf16.msra.mxu0 0
        %533 = vmatprep.subr.bf16.mxu0 0
        %534 = vmatpush1.bf16.msra.mxu0 0
        %535 = vmatprep.subr.bf16.mxu0 0
        %536 = vmatpush1.bf16.msra.mxu0 0
        %537 = vmatprep.subr.bf16.mxu0 0
        %538 = vmatpush1.bf16.msra.mxu0 0
        %539 = vmatprep.subr.bf16.mxu0 0
        %540 = vmatpush1.bf16.msra.mxu0 0
        %541 = vmatprep.mubr.bf16.mxu0 0
        %542 = vmatmul.mubr.bf16.gmra.mrb[0].mxu0 %v507
        %v543 = vpop.f32.mrb[0].mxu0
        %v544 = vadd.f32 0.0, %v543
        %v545 = vpop.f32.mrb[0].mxu0
        %v546 = vadd.f32 0.0, %v545
        %v547 = vpop.f32.mrb[0].mxu0
        %v548 = vpop.f32.mrb[0].mxu0
        %549 = vdwg.mxu0
        %v553 = vsel %vm505, %v478, 0
        %555 = vmatprep.subr.bf16.mxu0 %v496
        %556 = vmatpush1.bf16.msra.mxu0 %v495
        %557 = vmatprep.subr.bf16.mxu0 0
        %558 = vmatpush1.bf16.msra.mxu0 0
        %559 = vmatprep.subr.bf16.mxu0 0
        %560 = vmatpush1.bf16.msra.mxu0 0
        %561 = vmatprep.subr.bf16.mxu0 0
        %562 = vmatpush1.bf16.msra.mxu0 0
        %563 = vmatprep.subr.bf16.mxu0 0
        %564 = vmatpush1.bf16.msra.mxu0 0
        %565 = vmatprep.subr.bf16.mxu0 0
        %566 = vmatpush1.bf16.msra.mxu0 0
        %567 = vmatprep.subr.bf16.mxu0 0
        %568 = vmatpush1.bf16.msra.mxu0 0
        %569 = vmatprep.subr.bf16.mxu0 0
        %570 = vmatpush1.bf16.msra.mxu0 0
        %571 = vmatprep.subr.bf16.mxu0 0
        %572 = vmatpush1.bf16.msra.mxu0 0
        %573 = vmatprep.subr.bf16.mxu0 0
        %574 = vmatpush1.bf16.msra.mxu0 0
        %575 = vmatprep.subr.bf16.mxu0 0
        %576 = vmatpush1.bf16.msra.mxu0 0
        %577 = vmatprep.subr.bf16.mxu0 0
        %578 = vmatpush1.bf16.msra.mxu0 0
        %579 = vmatprep.subr.bf16.mxu0 0
        %580 = vmatpush1.bf16.msra.mxu0 0
        %581 = vmatprep.subr.bf16.mxu0 0
        %582 = vmatpush1.bf16.msra.mxu0 0
        %583 = vmatprep.subr.bf16.mxu0 0
        %584 = vmatpush1.bf16.msra.mxu0 0
        %585 = vmatprep.subr.bf16.mxu0 0
        %586 = vmatpush1.bf16.msra.mxu0 0
        %587 = vmatprep.mubr.bf16.mxu0 0
        %588 = vmatmul.mubr.bf16.gmra.mrb[0].mxu0 %v553
        %v589 = vpop.f32.mrb[0].mxu0
        %v590 = vadd.f32 %v544, %v589
        %v591 = vpop.f32.mrb[0].mxu0
        %v592 = vadd.f32 %v546, %v591
        %v593 = vpop.f32.mrb[0].mxu0
        %v594 = vpop.f32.mrb[0].mxu0
        %595 = vdwg.mxu0
        %596 = vrot.lane.b32.xlu0 %v495, 126
        %v597 = vpop.permute.xlu0 %596
        %598 = vrot.lane.b32.xlu0 %v496, 126
        %v599 = vpop.permute.xlu0 %598
        %vm600 = vcmask 1031168
        %v601 = vsel %vm600, %v597, %v599
        %v605 = vsel %vm505, %v480, 0
        %607 = vmatprep.subr.bf16.mxu0 %v599
        %608 = vmatpush1.bf16.msra.mxu0 %v601
        %609 = vmatprep.subr.bf16.mxu0 0
        %610 = vmatpush1.bf16.msra.mxu0 0
        %611 = vmatprep.subr.bf16.mxu0 0
        %612 = vmatpush1.bf16.msra.mxu0 0
        %613 = vmatprep.subr.bf16.mxu0 0
        %614 = vmatpush1.bf16.msra.mxu0 0
        %615 = vmatprep.subr.bf16.mxu0 0
        %616 = vmatpush1.bf16.msra.mxu0 0
        %617 = vmatprep.subr.bf16.mxu0 0
        %618 = vmatpush1.bf16.msra.mxu0 0
        %619 = vmatprep.subr.bf16.mxu0 0
        %620 = vmatpush1.bf16.msra.mxu0 0
        %621 = vmatprep.subr.bf16.mxu0 0
        %622 = vmatpush1.bf16.msra.mxu0 0
        %623 = vmatprep.subr.bf16.mxu0 0
        %624 = vmatpush1.bf16.msra.mxu0 0
        %625 = vmatprep.subr.bf16.mxu0 0
        %626 = vmatpush1.bf16.msra.mxu0 0
        %627 = vmatprep.subr.bf16.mxu0 0
        %628 = vmatpush1.bf16.msra.mxu0 0
        %629 = vmatprep.subr.bf16.mxu0 0
        %630 = vmatpush1.bf16.msra.mxu0 0
        %631 = vmatprep.subr.bf16.mxu0 0
        %632 = vmatpush1.bf16.msra.mxu0 0
        %633 = vmatprep.subr.bf16.mxu0 0
        %634 = vmatpush1.bf16.msra.mxu0 0
        %635 = vmatprep.subr.bf16.mxu0 0
        %636 = vmatpush1.bf16.msra.mxu0 0
        %637 = vmatprep.subr.bf16.mxu0 0
        %638 = vmatpush1.bf16.msra.mxu0 0
        %639 = vmatprep.mubr.bf16.mxu0 0
        %640 = vmatmul.mubr.bf16.gmra.mrb[0].mxu0 %v605
        %v641 = vpop.f32.mrb[0].mxu0
        %v642 = vadd.f32 0.0, %v641
        %v643 = vpop.f32.mrb[0].mxu0
        %v644 = vadd.f32 0.0, %v643
        %v645 = vpop.f32.mrb[0].mxu0
        %v646 = vpop.f32.mrb[0].mxu0
        %647 = vdwg.mxu0
        %v648 = vadd.f32 %v590, %v642
        %v649 = vadd.f32 %v592, %v644
        %650 = vrot.lane.b32.xlu0 %v495, 110
        %v651 = vpop.permute.xlu0 %650
        %652 = vrot.lane.b32.xlu0 %v496, 110
        %v653 = vpop.permute.xlu0 %652
        %vm654 = vcmask 900096
        %v655 = vsel %vm654, %v651, %v653
        %v659 = vsel %vm505, %v481, 0
        %661 = vmatprep.subr.bf16.mxu0 %v653
        %662 = vmatpush1.bf16.msra.mxu0 %v655
        %663 = vmatprep.subr.bf16.mxu0 0
        %664 = vmatpush1.bf16.msra.mxu0 0
        %665 = vmatprep.subr.bf16.mxu0 0
        %666 = vmatpush1.bf16.msra.mxu0 0
        %667 = vmatprep.subr.bf16.mxu0 0
        %668 = vmatpush1.bf16.msra.mxu0 0
        %669 = vmatprep.subr.bf16.mxu0 0
        %670 = vmatpush1.bf16.msra.mxu0 0
        %671 = vmatprep.subr.bf16.mxu0 0
        %672 = vmatpush1.bf16.msra.mxu0 0
        %673 = vmatprep.subr.bf16.mxu0 0
        %674 = vmatpush1.bf16.msra.mxu0 0
        %675 = vmatprep.subr.bf16.mxu0 0
        %676 = vmatpush1.bf16.msra.mxu0 0
        %677 = vmatprep.subr.bf16.mxu0 0
        %678 = vmatpush1.bf16.msra.mxu0 0
        %679 = vmatprep.subr.bf16.mxu0 0
        %680 = vmatpush1.bf16.msra.mxu0 0
        %681 = vmatprep.subr.bf16.mxu0 0
        %682 = vmatpush1.bf16.msra.mxu0 0
        %683 = vmatprep.subr.bf16.mxu0 0
        %684 = vmatpush1.bf16.msra.mxu0 0
        %685 = vmatprep.subr.bf16.mxu0 0
        %686 = vmatpush1.bf16.msra.mxu0 0
        %687 = vmatprep.subr.bf16.mxu0 0
        %688 = vmatpush1.bf16.msra.mxu0 0
        %689 = vmatprep.subr.bf16.mxu0 0
        %690 = vmatpush1.bf16.msra.mxu0 0
        %691 = vmatprep.subr.bf16.mxu0 0
        %692 = vmatpush1.bf16.msra.mxu0 0
        %693 = vmatprep.mubr.bf16.mxu0 0
        %694 = vmatmul.mubr.bf16.gmra.mrb[0].mxu0 %v659
        %v695 = vpop.f32.mrb[0].mxu0
        %v696 = vadd.f32 0.0, %v695
        %v697 = vpop.f32.mrb[0].mxu0
        %v698 = vadd.f32 0.0, %v697
        %v699 = vpop.f32.mrb[0].mxu0
        %v700 = vpop.f32.mrb[0].mxu0
        %701 = vdwg.mxu0
        %v702 = vadd.f32 %v648, %v696
        %v703 = vadd.f32 %v649, %v698
        %704 = vrot.lane.b32.xlu0 %v495, 109
        %v705 = vpop.permute.xlu0 %704
        %706 = vrot.lane.b32.xlu0 %v496, 109
        %v707 = vpop.permute.xlu0 %706
        %vm708 = vcmask 891904
        %v709 = vsel %vm708, %v705, %v707
        %v713 = vsel %vm505, %v482, 0
        %715 = vmatprep.subr.bf16.mxu0 %v707
        %716 = vmatpush1.bf16.msra.mxu0 %v709
        %717 = vmatprep.subr.bf16.mxu0 0
        %718 = vmatpush1.bf16.msra.mxu0 0
        %719 = vmatprep.subr.bf16.mxu0 0
        %720 = vmatpush1.bf16.msra.mxu0 0
        %721 = vmatprep.subr.bf16.mxu0 0
        %722 = vmatpush1.bf16.msra.mxu0 0
        %723 = vmatprep.subr.bf16.mxu0 0
        %724 = vmatpush1.bf16.msra.mxu0 0
        %725 = vmatprep.subr.bf16.mxu0 0
        %726 = vmatpush1.bf16.msra.mxu0 0
        %727 = vmatprep.subr.bf16.mxu0 0
        %728 = vmatpush1.bf16.msra.mxu0 0
        %729 = vmatprep.subr.bf16.mxu0 0
        %730 = vmatpush1.bf16.msra.mxu0 0
        %731 = vmatprep.subr.bf16.mxu0 0
        %732 = vmatpush1.bf16.msra.mxu0 0
        %733 = vmatprep.subr.bf16.mxu0 0
        %734 = vmatpush1.bf16.msra.mxu0 0
        %735 = vmatprep.subr.bf16.mxu0 0
        %736 = vmatpush1.bf16.msra.mxu0 0
        %737 = vmatprep.subr.bf16.mxu0 0
        %738 = vmatpush1.bf16.msra.mxu0 0
        %739 = vmatprep.subr.bf16.mxu0 0
        %740 = vmatpush1.bf16.msra.mxu0 0
        %741 = vmatprep.subr.bf16.mxu0 0
        %742 = vmatpush1.bf16.msra.mxu0 0
        %743 = vmatprep.subr.bf16.mxu0 0
        %744 = vmatpush1.bf16.msra.mxu0 0
        %745 = vmatprep.subr.bf16.mxu0 0
        %746 = vmatpush1.bf16.msra.mxu0 0
        %747 = vmatprep.mubr.bf16.mxu0 0
        %748 = vmatmul.mubr.bf16.gmra.mrb[0].mxu0 %v713
        %v749 = vpop.f32.mrb[0].mxu0
        %v750 = vadd.f32 0.0, %v749
        %v751 = vpop.f32.mrb[0].mxu0
        %v752 = vadd.f32 0.0, %v751
        %v753 = vpop.f32.mrb[0].mxu0
        %v754 = vpop.f32.mrb[0].mxu0
        %755 = vdwg.mxu0
        %v756 = vadd.f32 %v702, %v750
        %v757 = vadd.f32 %v703, %v752
        %758 = vrot.lane.b32.xlu0 %v495, 108
        %v759 = vpop.permute.xlu0 %758
        %760 = vrot.lane.b32.xlu0 %v496, 108
        %v761 = vpop.permute.xlu0 %760
        %vm762 = vcmask 883712
        %v763 = vsel %vm762, %v759, %v761
        %v767 = vsel %vm505, %v483, 0
        %769 = vmatprep.subr.bf16.mxu0 %v761
        %770 = vmatpush1.bf16.msra.mxu0 %v763
        %771 = vmatprep.subr.bf16.mxu0 0
        %772 = vmatpush1.bf16.msra.mxu0 0
        %773 = vmatprep.subr.bf16.mxu0 0
        %774 = vmatpush1.bf16.msra.mxu0 0
        %775 = vmatprep.subr.bf16.mxu0 0
        %776 = vmatpush1.bf16.msra.mxu0 0
        %777 = vmatprep.subr.bf16.mxu0 0
        %778 = vmatpush1.bf16.msra.mxu0 0
        %779 = vmatprep.subr.bf16.mxu0 0
        %780 = vmatpush1.bf16.msra.mxu0 0
        %781 = vmatprep.subr.bf16.mxu0 0
        %782 = vmatpush1.bf16.msra.mxu0 0
        %783 = vmatprep.subr.bf16.mxu0 0
        %784 = vmatpush1.bf16.msra.mxu0 0
        %785 = vmatprep.subr.bf16.mxu0 0
        %786 = vmatpush1.bf16.msra.mxu0 0
        %787 = vmatprep.subr.bf16.mxu0 0
        %788 = vmatpush1.bf16.msra.mxu0 0
        %789 = vmatprep.subr.bf16.mxu0 0
        %790 = vmatpush1.bf16.msra.mxu0 0
        %791 = vmatprep.subr.bf16.mxu0 0
        %792 = vmatpush1.bf16.msra.mxu0 0
        %793 = vmatprep.subr.bf16.mxu0 0
        %794 = vmatpush1.bf16.msra.mxu0 0
        %795 = vmatprep.subr.bf16.mxu0 0
        %796 = vmatpush1.bf16.msra.mxu0 0
        %797 = vmatprep.subr.bf16.mxu0 0
        %798 = vmatpush1.bf16.msra.mxu0 0
        %799 = vmatprep.subr.bf16.mxu0 0
        %800 = vmatpush1.bf16.msra.mxu0 0
        %801 = vmatprep.mubr.bf16.mxu0 0
        %802 = vmatmul.mubr.bf16.gmra.mrb[0].mxu0 %v767
        %v803 = vpop.f32.mrb[0].mxu0
        %v804 = vadd.f32 0.0, %v803
        %v805 = vpop.f32.mrb[0].mxu0
        %v806 = vadd.f32 0.0, %v805
        %v807 = vpop.f32.mrb[0].mxu0
        %v808 = vpop.f32.mrb[0].mxu0
        %809 = vdwg.mxu0
        %v810 = vadd.f32 %v756, %v804
        %v811 = vadd.f32 %v757, %v806
        %812 = vrot.lane.b32.xlu0 %v495, 92
        %v813 = vpop.permute.xlu0 %812
        %814 = vrot.lane.b32.xlu0 %v496, 92
        %v815 = vpop.permute.xlu0 %814
        %vm816 = vcmask 752640
        %v817 = vsel %vm816, %v813, %v815
        %v821 = vsel %vm505, %v484, 0
        %823 = vmatprep.subr.bf16.mxu0 %v815
        %824 = vmatpush1.bf16.msra.mxu0 %v817
        %825 = vmatprep.subr.bf16.mxu0 0
        %826 = vmatpush1.bf16.msra.mxu0 0
        %827 = vmatprep.subr.bf16.mxu0 0
        %828 = vmatpush1.bf16.msra.mxu0 0
        %829 = vmatprep.subr.bf16.mxu0 0
        %830 = vmatpush1.bf16.msra.mxu0 0
        %831 = vmatprep.subr.bf16.mxu0 0
        %832 = vmatpush1.bf16.msra.mxu0 0
        %833 = vmatprep.subr.bf16.mxu0 0
        %834 = vmatpush1.bf16.msra.mxu0 0
        %835 = vmatprep.subr.bf16.mxu0 0
        %836 = vmatpush1.bf16.msra.mxu0 0
        %837 = vmatprep.subr.bf16.mxu0 0
        %838 = vmatpush1.bf16.msra.mxu0 0
        %839 = vmatprep.subr.bf16.mxu0 0
        %840 = vmatpush1.bf16.msra.mxu0 0
        %841 = vmatprep.subr.bf16.mxu0 0
        %842 = vmatpush1.bf16.msra.mxu0 0
        %843 = vmatprep.subr.bf16.mxu0 0
        %844 = vmatpush1.bf16.msra.mxu0 0
        %845 = vmatprep.subr.bf16.mxu0 0
        %846 = vmatpush1.bf16.msra.mxu0 0
        %847 = vmatprep.subr.bf16.mxu0 0
        %848 = vmatpush1.bf16.msra.mxu0 0
        %849 = vmatprep.subr.bf16.mxu0 0
        %850 = vmatpush1.bf16.msra.mxu0 0
        %851 = vmatprep.subr.bf16.mxu0 0
        %852 = vmatpush1.bf16.msra.mxu0 0
        %853 = vmatprep.subr.bf16.mxu0 0
        %854 = vmatpush1.bf16.msra.mxu0 0
        %855 = vmatprep.mubr.bf16.mxu0 0
        %856 = vmatmul.mubr.bf16.gmra.mrb[0].mxu0 %v821
        %v857 = vpop.f32.mrb[0].mxu0
        %v858 = vadd.f32 0.0, %v857
        %v859 = vpop.f32.mrb[0].mxu0
        %v860 = vadd.f32 0.0, %v859
        %v861 = vpop.f32.mrb[0].mxu0
        %v862 = vpop.f32.mrb[0].mxu0
        %863 = vdwg.mxu0
        %v864 = vadd.f32 %v810, %v858
        %v865 = vadd.f32 %v811, %v860
        %866 = vrot.lane.b32.xlu0 %v495, 91
        %v867 = vpop.permute.xlu0 %866
        %868 = vrot.lane.b32.xlu0 %v496, 91
        %v869 = vpop.permute.xlu0 %868
        %vm870 = vcmask 744448
        %v871 = vsel %vm870, %v867, %v869
        %v875 = vsel %vm505, %v485, 0
        %877 = vmatprep.subr.bf16.mxu0 %v869
        %878 = vmatpush1.bf16.msra.mxu0 %v871
        %879 = vmatprep.subr.bf16.mxu0 0
        %880 = vmatpush1.bf16.msra.mxu0 0
        %881 = vmatprep.subr.bf16.mxu0 0
        %882 = vmatpush1.bf16.msra.mxu0 0
        %883 = vmatprep.subr.bf16.mxu0 0
        %884 = vmatpush1.bf16.msra.mxu0 0
        %885 = vmatprep.subr.bf16.mxu0 0
        %886 = vmatpush1.bf16.msra.mxu0 0
        %887 = vmatprep.subr.bf16.mxu0 0
        %888 = vmatpush1.bf16.msra.mxu0 0
        %889 = vmatprep.subr.bf16.mxu0 0
        %890 = vmatpush1.bf16.msra.mxu0 0
        %891 = vmatprep.subr.bf16.mxu0 0
        %892 = vmatpush1.bf16.msra.mxu0 0
        %893 = vmatprep.subr.bf16.mxu0 0
        %894 = vmatpush1.bf16.msra.mxu0 0
        %895 = vmatprep.subr.bf16.mxu0 0
        %896 = vmatpush1.bf16.msra.mxu0 0
        %897 = vmatprep.subr.bf16.mxu0 0
        %898 = vmatpush1.bf16.msra.mxu0 0
        %899 = vmatprep.subr.bf16.mxu0 0
        %900 = vmatpush1.bf16.msra.mxu0 0
        %901 = vmatprep.subr.bf16.mxu0 0
        %902 = vmatpush1.bf16.msra.mxu0 0
        %903 = vmatprep.subr.bf16.mxu0 0
        %904 = vmatpush1.bf16.msra.mxu0 0
        %905 = vmatprep.subr.bf16.mxu0 0
        %906 = vmatpush1.bf16.msra.mxu0 0
        %907 = vmatprep.subr.bf16.mxu0 0
        %908 = vmatpush1.bf16.msra.mxu0 0
        %909 = vmatprep.mubr.bf16.mxu0 0
        %910 = vmatmul.mubr.bf16.gmra.mrb[0].mxu0 %v875
        %v911 = vpop.f32.mrb[0].mxu0
        %v912 = vadd.f32 0.0, %v911
        %v913 = vpop.f32.mrb[0].mxu0
        %v914 = vadd.f32 0.0, %v913
        %v915 = vpop.f32.mrb[0].mxu0
        %v916 = vpop.f32.mrb[0].mxu0
        %917 = vdwg.mxu0
        %v918 = vadd.f32 %v864, %v912
        %v919 = vadd.f32 %v865, %v914
        %920 = vrot.lane.b32.xlu0 %v495, 90
        %v921 = vpop.permute.xlu0 %920
        %922 = vrot.lane.b32.xlu0 %v496, 90
        %v923 = vpop.permute.xlu0 %922
        %vm924 = vcmask 736256
        %v925 = vsel %vm924, %v921, %v923
        %v929 = vsel %vm505, %v486, 0
        %931 = vmatprep.subr.bf16.mxu0 %v923
        %932 = vmatpush1.bf16.msra.mxu0 %v925
        %933 = vmatprep.subr.bf16.mxu0 0
        %934 = vmatpush1.bf16.msra.mxu0 0
        %935 = vmatprep.subr.bf16.mxu0 0
        %936 = vmatpush1.bf16.msra.mxu0 0
        %937 = vmatprep.subr.bf16.mxu0 0
        %938 = vmatpush1.bf16.msra.mxu0 0
        %939 = vmatprep.subr.bf16.mxu0 0
        %940 = vmatpush1.bf16.msra.mxu0 0
        %941 = vmatprep.subr.bf16.mxu0 0
        %942 = vmatpush1.bf16.msra.mxu0 0
        %943 = vmatprep.subr.bf16.mxu0 0
        %944 = vmatpush1.bf16.msra.mxu0 0
        %945 = vmatprep.subr.bf16.mxu0 0
        %946 = vmatpush1.bf16.msra.mxu0 0
        %947 = vmatprep.subr.bf16.mxu0 0
        %948 = vmatpush1.bf16.msra.mxu0 0
        %949 = vmatprep.subr.bf16.mxu0 0
        %950 = vmatpush1.bf16.msra.mxu0 0
        %951 = vmatprep.subr.bf16.mxu0 0
        %952 = vmatpush1.bf16.msra.mxu0 0
        %953 = vmatprep.subr.bf16.mxu0 0
        %954 = vmatpush1.bf16.msra.mxu0 0
        %955 = vmatprep.subr.bf16.mxu0 0
        %956 = vmatpush1.bf16.msra.mxu0 0
        %957 = vmatprep.subr.bf16.mxu0 0
        %958 = vmatpush1.bf16.msra.mxu0 0
        %959 = vmatprep.subr.bf16.mxu0 0
        %960 = vmatpush1.bf16.msra.mxu0 0
        %961 = vmatprep.subr.bf16.mxu0 0
        %962 = vmatpush1.bf16.msra.mxu0 0
        %963 = vmatprep.mubr.bf16.mxu0 0
        %964 = vmatmul.mubr.bf16.gmra.mrb[0].mxu0 %v929
        %v965 = vpop.f32.mrb[0].mxu0
        %v966 = vadd.f32 0.0, %v965
        %v967 = vpop.f32.mrb[0].mxu0
        %v968 = vadd.f32 0.0, %v967
        %v969 = vpop.f32.mrb[0].mxu0
        %v970 = vpop.f32.mrb[0].mxu0
        %971 = vdwg.mxu0
        %v972 = vadd.f32 %v918, %v966
        %v973 = vadd.f32 %v919, %v968
        %s974 = sld [smem:[#allocation3]]
        %v975 = vld [vmem:[%s347] sm:$0x3]
        %v976 = vstv %s974
        %v977 = vmul.f32 %v976, %v975
        %v979 = vlaneseq
        %v980 = vshrl.u32 %v979, 7
        %v981 = vsub.s32 0, %v980
        %v982 = vrot.slane %v977, %v981
        %v983 = vlaneseq
        %v984 = vshrl.u32 %v983, 7
        %v985 = vsub.s32 1, %v984
        %v986 = vrot.slane %v977, %v985
        %v989 = vadd.f32 %v972, %v982
        %v990 = vadd.f32 %v973, %v986
        %v991 = vld [vmem:[#allocation12] sm:$0xff]
        %993 = vset.pattern.permute.xlu0 0
        %994 = vperm.xlu0 %993, %v991
        %v995 = vpop.permute.xlu0 %994
        %v997 = vadd.f32 %v989, %v995
        %v998 = vadd.f32 %v990, %v995
        %vm999 = vcmp.ge.f32.partialorder %v997, 0.0
        %vm1000 = vcmp.ge.f32.partialorder %v998, 0.0
        %v1001 = vmul.f32 %v997, 0.2
        %v1002 = vmul.f32 %v998, 0.2
        %v1003 = vsel %vm999, %v997, %v1001
        %v1004 = vsel %vm1000, %v998, %v1002
        %v1005 = vmul.f32 %v1003, 1.4142135
        %v1006 = vmul.f32 %v1004, 1.4142135
        %1007 = vst [vmem:[%s388] sm:$0xff] %v1005
        %1008 = vst.msk [vmem:[%s388 + $0x8] sm:$0xff] %vm505, %v1006
        %s1009 = sand.u32 %s195, 1
        %s1010 = scalar_lea.sflag [#allocation6], %s1009
        %s1011 = sand.u32 %s195, 1
        %s1012 = smul.addr %s1011, 16
        %s1013 = scalar_lea.vmem [#allocation13], %s1012
        // Predicated region
        $region69: #{tpu_custom_call.1} parent=43 // pred_check
          %p1014 = pneg %p205
        $region70: #{tpu_custom_call.1} parent=43 // pred_check_branch
          %1016 = sbr.rel (%p1014) target = $region72
        $region71: #{tpu_custom_call.1} parent=43 // pred_region
          %s1018 = ssub.s32 256, 256
          %1019 = vsyncadd %s1010, %s1018
          %s1020 = smul.addr %s33, 2
          %s1021 = smul.addr %s32, 4
          %s1022 = sadd.s32 %s1020, %s1021
          %s1023 = smul.addr %s1022, 128
          %s1024 = scalar_lea.hbm %s6, %s1023
          %s1026 = sshll.u32 %s1013, 4
          %s1027 = int_to_ptr.vmem [resolvable:$true] %s1026
          %1029 = dma.vmem_to_hbm [thread:$0]  %s1027, 256, %s1024, %s1010
        $region72: #{tpu_custom_call.1} parent=43 // pred_fallthru
          _
      $region44: #{tpu_custom_call.1} parent=5 // pred_fallthru
        _
      %p1030 = scmp.le.s32.totalorder 2, %s23
      // Predicated region
      $region73: #{tpu_custom_call.1} parent=5 // pred_check
        %p1031 = pneg %p1030
      $region74: #{tpu_custom_call.1} parent=5 // pred_check_branch
        %1033 = sbr.rel (%p1031) target = $region76
      $region75: #{tpu_custom_call.1} parent=5 // pred_region
        %s1034 = ssub.s32 %s23, 2
        // Predicated region
        $region77: #{tpu_custom_call.1} parent=75 // pred_check
          %p1035 = pneg %p211
        $region78: #{tpu_custom_call.1} parent=75 // pred_check_branch
          %1037 = sbr.rel (%p1035) target = $region80
        $region79: #{tpu_custom_call.1} parent=75 // pred_region
          %s1038 = sand.u32 %s196, 1
          %s1039 = scalar_lea.sflag [#allocation6], %s1038
          %s1040 = sand.u32 %s196, 1
          %s1041 = smul.addr %s1040, 16
          %s1042 = scalar_lea.vmem [#allocation13], %s1041
          %1043 = dma.done %s1039, 256
        $region80: #{tpu_custom_call.1} parent=75 // pred_fallthru
          _
      $region76: #{tpu_custom_call.1} parent=5 // pred_fallthru
        _
    $region6: #{tpu_custom_call.1} parent=1 // loop_footer
      %s27 = sadd.s32 1, %s23
    $region7: #{tpu_custom_call.1} parent=1 // loop_footer_branch
      %22 = sbr.rel target = $region3
    $region8: #{tpu_custom_call.1} parent=1 // loop_exit
      _
    %1044 = vsyncpa [#allocation5], 1
    %s1045 = scalar_lea.sflag [#allocation5], 1
    %1046 = vsyncpa %s1045, 1
    %1047 = vsyncpa [#allocation8], 1
    %s1048 = scalar_lea.sflag [#allocation8], 1
    %1049 = vsyncpa %s1048, 1
    %1050 = vsyncpa [#allocation11], 1
    %s1051 = scalar_lea.sflag [#allocation11], 1
    %1052 = vsyncpa %s1051, 1
    %1053 = vsyncpa [#allocation6], 1
    %s1054 = scalar_lea.sflag [#allocation6], 1
    %1055 = vsyncpa %s1054, 1

</llo_original>
